<compile_context>
chip_gen: v5e
topology: v5e:2x2
jax: 0.10.0
libtpu: 0.0.40
codegen_flags: <defaults>
</compile_context>

<pallas_src>
import functools

import jax
import jax.numpy as jnp
from jax.experimental import pallas as pl
from jax.experimental.pallas import tpu as pltpu

_LANE = 128
_SUBLANE = 8
_TARGET_BLOCK_BYTES = 8 * 1024 * 1024   # HBM bytes per grid step
_MAX_TILE_K = 1024                      # cap on minor-dim width (keeps the vreg
                                        # strip accumulator <= 8 f32 lane-vregs)
_CHUNK_LANE_VREGS = 8                   # ~8 lane-vregs per inner-loop chunk


def _fro_partial_kernel(x_ref, o_ref, *, n_rows, n_cols, tile_r, tile_k,
                        chunk_r, num_r, num_c, row_ragged, col_ragged):
    """Reduce one (tile_r, tile_k) block to sum(x^2); write it to o_ref."""
    g = pl.program_id(0)
    if num_c == 1:
        i, j = g, 0
    else:
        i, j = g // num_c, g % num_c

    def block_sumsq(mask_rows, mask_cols):
        # Chunked, vreg-resident accumulation: 1 vld + 1 mul + 1 add per input
        # vreg, zero extra VMEM traffic.
        rows_left = (n_rows - i * tile_r) if mask_rows else 0
        cols_left = (n_cols - j * tile_k) if mask_cols else 0

        def body(c, acc):
            start = pl.multiple_of(c * chunk_r, chunk_r)
            xc = x_ref[pl.ds(start, chunk_r), :].astype(jnp.float32)
            if mask_rows or mask_cols:
                valid = None
                if mask_rows:
                    r_idx = (jax.lax.broadcasted_iota(jnp.int32, xc.shape, 0)
                             + c * chunk_r)
                    valid = r_idx < rows_left
                if mask_cols:
                    cmask = jax.lax.broadcasted_iota(jnp.int32, xc.shape, 1) < cols_left
                    valid = cmask if valid is None else jnp.logical_and(valid, cmask)
                xc = jnp.where(valid, xc, jnp.float32(0.0))
            return acc + xc * xc

        acc = jax.lax.fori_loop(0, tile_r // chunk_r, body,
                                jnp.zeros((chunk_r, tile_k), jnp.float32))
        return jnp.sum(acc)   # one small cross-lane reduce per ~8 MiB block

    def emit(partial):
        o_ref[...] = jnp.full(o_ref.shape, partial, dtype=jnp.float32)

    tail = None
    if row_ragged:
        tail = i == num_r - 1
    if col_ragged:
        tc = j == num_c - 1
        tail = tc if tail is None else jnp.logical_or(tail, tc)

    if tail is None:
        # Evenly tiled: no masking work anywhere.
        emit(block_sumsq(False, False))
    else:
        @pl.when(jnp.logical_not(tail))
        def _():
            emit(block_sumsq(False, False))

        @pl.when(tail)
        def _():
            emit(block_sumsq(row_ragged, col_ragged))


def _lane_friendly_view(n_rows, n_cols):
    """Free re-view of the flat tensor toward _LANE <= cols <= _MAX_TILE_K."""
    for p in (2, 3, 5, 7):
        while n_cols > _MAX_TILE_K and n_cols % p == 0:
            n_cols //= p
            n_rows *= p
    for p in (2, 3, 5, 7):
        while n_cols < _LANE and n_rows % p == 0 and n_cols * p <= _MAX_TILE_K:
            n_cols *= p
            n_rows //= p
    return n_rows, n_cols


def _choose_tiles(n_rows, n_cols, itemsize):
    """Pick (tile_r, tile_k, chunk_r): ~8 MiB blocks, layout-legal tiling."""
    # Second-minor alignment by dtype packing (f32: 8, bf16: 16, int8/fp8: 32).
    row_align = {4: _SUBLANE, 2: 2 * _SUBLANE, 1: 4 * _SUBLANE}.get(itemsize, _SUBLANE)

    # Minor dim: full width (always layout-legal) or a 128-multiple cap.
    tile_k = n_cols if n_cols <= _MAX_TILE_K else _MAX_TILE_K

    lane_vregs = pl.cdiv(tile_k, _LANE)
    chunk_r = max(1, _CHUNK_LANE_VREGS // lane_vregs) * _SUBLANE
    chunk_r = max(row_align, (chunk_r // row_align) * row_align)

    if n_rows <= chunk_r:
        # Tiny row count: one full-dim row tile processed as a single chunk.
        return n_rows, tile_k, n_rows

    # Rows per block: target ~_TARGET_BLOCK_BYTES of (lane-padded) bytes.
    padded_k = lane_vregs * _LANE
    rows_budget = _TARGET_BLOCK_BYTES // (padded_k * itemsize)
    tile_r = max(chunk_r, (rows_budget // chunk_r) * chunk_r)
    if tile_r > n_rows:
        tile_r = max(chunk_r, (n_rows // chunk_r) * chunk_r)

    # v7x megacore: keep >= 2 blocks on the single 'parallel' axis.
    num_blocks = pl.cdiv(n_rows, tile_r) * pl.cdiv(n_cols, tile_k)
    if num_blocks == 1 and n_rows >= 2 * chunk_r:
        tile_r = max(chunk_r, (pl.cdiv(n_rows, 2) // chunk_r) * chunk_r)

    return tile_r, tile_k, chunk_r


def fro_loss(x: jax.Array) -> jax.Array:
    """Pallas implementation of Fro_LOSS.forward for an NCHW tensor."""
    B, C, H, W = x.shape
    n_elems = B * C * H * W
    scale = 1.0 / float(n_elems)
    itemsize = jnp.dtype(x.dtype).itemsize

    # Free re-views of the contiguous buffer (no padding / HBM round trip).
    R, K = _lane_friendly_view(B * C, H * W)
    x2 = x.reshape(R, K)

    tile_r, tile_k, chunk_r = _choose_tiles(R, K, itemsize)
    num_r = pl.cdiv(R, tile_r)
    num_c = pl.cdiv(K, tile_k)
    num_blocks = num_r * num_c
    row_ragged = (R % tile_r) != 0
    col_ragged = (K % tile_k) != 0

    kernel = functools.partial(
        _fro_partial_kernel,
        n_rows=R, n_cols=K, tile_r=tile_r, tile_k=tile_k, chunk_r=chunk_r,
        num_r=num_r, num_c=num_c, row_ragged=row_ragged, col_ragged=col_ragged)

    if num_c == 1:
        in_index = lambda g: (g, 0)
    else:
        in_index = lambda g: (g // num_c, g % num_c)

    cost = pl.CostEstimate(
        flops=2 * n_elems,
        transcendentals=0,
        bytes_accessed=n_elems * itemsize + num_blocks * _LANE * 4)

    # Double-buffered input block + tiny output; raise v5e's 16 MiB scoped
    # default, stay well under v7x's 64 MiB physical VMEM.
    padded_k = pl.cdiv(tile_k, _LANE) * _LANE
    in_block_vmem = tile_r * padded_k * itemsize
    vmem_limit = int(min(64 * 1024 * 1024,
                         max(32 * 1024 * 1024,
                             2 * in_block_vmem + 8 * 1024 * 1024)))

    partials = pl.pallas_call(
        kernel,
        out_shape=jax.ShapeDtypeStruct((num_blocks, 1, _LANE), jnp.float32),
        grid_spec=pltpu.PrefetchScalarGridSpec(
            num_scalar_prefetch=0,
            grid=(num_blocks,),
            in_specs=[pl.BlockSpec((tile_r, tile_k), in_index)],
            out_specs=pl.BlockSpec((1, 1, _LANE), lambda g: (g, 0, 0)),
        ),
        compiler_params=pltpu.CompilerParams(
            # Every block is an independent partial sum -> whole grid is
            # 'parallel' (sharded across both TensorCores on v7x).
            dimension_semantics=("parallel",),
            vmem_limit_bytes=vmem_limit),
        cost_estimate=cost,
    )(x2)

    # Tiny finalization in the wrapper: sum the per-block partials + scale.
    return (jnp.sum(partials[:, 0, 0]) * jnp.float32(scale)).astype(jnp.float32)


def fro_loss_ref(x: jax.Array) -> jax.Array:
    """Pure-JAX reference mirroring the PyTorch module."""
    _, _, h, w = x.shape
    fro = jnp.sum(jnp.square(x), axis=(2, 3)) / (h * w)
    return jnp.mean(fro)


if __name__ == "__main__":
    key = jax.random.PRNGKey(0)
    x = jax.random.normal(key, (2, 4, 16, 16), dtype=jnp.float32)

    out = fro_loss(x)
    jax.block_until_ready(out)

    ref = fro_loss_ref(x)
    assert jnp.allclose(out, ref, rtol=1e-5, atol=1e-6), (out, ref)

    print("KERNEL_OK")
</pallas_src>

<mosaic_0001>
module attributes {stable_mosaic.version = 11 : i64} {
  func.func @_fro_partial_kernel(%arg0: i32, %arg1: memref<8x256xf32, #tpu.memory_space<vmem>>, %arg2: memref<1x1x128xf32, #tpu.memory_space<vmem>>) attributes {dimension_semantics = [#tpu.dimension_semantics<parallel>], iteration_bounds = array<i64: 1>, scalar_prefetch = 0 : i64, scratch_operands = 0 : i64, tpu.core_type = #tpu.core_type<tc>, window_params = [{transform_indices = @transform_0, window_bounds = array<i64: 8, 256>}, {transform_indices = @transform_1, window_bounds = array<i64: 1, 1, 128>}]} {
    %cst = arith.constant 0.000000e+00 : f32
    %0 = vector.broadcast %cst : f32 to vector<8x256xf32>
    %c0_i32 = arith.constant 0 : i32
    %c8_i32 = arith.constant 8 : i32
    %1 = arith.muli %c0_i32, %c8_i32 : i32
    %2 = tpu.assume_multiple %1, 8 : i32
    %3 = arith.index_cast %2 : i32 to index
    %c0 = arith.constant 0 : index
    %4 = vector.load %arg1[%3, %c0] : memref<8x256xf32, #tpu.memory_space<vmem>>, vector<8x256xf32>
    %5 = arith.mulf %4, %4 : vector<8x256xf32>
    %6 = arith.addf %0, %5 : vector<8x256xf32>
    %c1_i32 = arith.constant 1 : i32
    %7 = vector.shape_cast %6 : vector<8x256xf32> to vector<1x8x256xf32>
    %cst_0 = arith.constant dense<0.000000e+00> : vector<1xf32>
    %8 = vector.multi_reduction <add>, %7, %cst_0 [1, 2] : vector<1x8x256xf32> to vector<1xf32>
    %9 = vector.shape_cast %8 : vector<1xf32> to vector<1x1x1xf32>
    %10 = vector.extract %9[0, 0, 0] : f32 from vector<1x1x1xf32>
    %11 = vector.broadcast %10 : f32 to vector<1x1x128xf32>
    %c0_1 = arith.constant 0 : index
    %c0_2 = arith.constant 0 : index
    %c0_3 = arith.constant 0 : index
    %12 = vector.load %arg2[%c0_1, %c0_2, %c0_3] : memref<1x1x128xf32, #tpu.memory_space<vmem>>, vector<1x1x128xf32>
    tpu.vector_store %arg2[%c0_1, %c0_2, %c0_3], %11 {strides = array<i32>} : memref<1x1x128xf32, #tpu.memory_space<vmem>>, vector<1x1x128xf32>,
    return
  }
  func.func @transform_0(%arg0: i32) -> (i32, i32) {
    %c0_i32 = arith.constant 0 : i32
    %c0_i32_0 = arith.constant 0 : i32
    return %arg0, %c0_i32 : i32, i32
  }
  func.func @transform_1(%arg0: i32) -> (i32, i32, i32) {
    %c0_i32 = arith.constant 0 : i32
    %c0_i32_0 = arith.constant 0 : i32
    %c0_i32_1 = arith.constant 0 : i32
    return %arg0, %c0_i32, %c0_i32_0 : i32, i32, i32
  }
}

</mosaic_0001>

<llo_original>
// kernel: tpu_custom_call.1
$region0: #{tpu_custom_call.1}
  #allocation0 [shape = 'u32[]', space=smem, size = 0x4, offset = 0x4, fixed_abs, tag = 'smem constant byte address 0x4 - core index']
  #allocation1 [shape = 'u32[72,128]{1,0:T(1,128)}', space=vmem, size = 0x9000, scoped, tag = 'internal scratch']
  %s0 = inlined_call_operand.hbm [shape: f32[8,256], index: 0, kind: input, shape index: {}]
  %s1 = inlined_call_operand.hbm [shape: f32[1,1,128], index: 1, kind: output, shape index: {}]
  %s2 = sld [smem:[#allocation0]]
  $region18: #{tpu_custom_call.1} parent=0
    _
  %s4 = ssub.s32 1, %s2
  %s5 = scalar_select 0, %s4, %s2
  $region1: #{tpu_custom_call.1} parent=0
    #allocation2 [shape = 'u8[8192]{0}', space=vmem, size = 0x2000, scoped, tag = 'input window, operand 0, single buffered']
    #allocation3 [shape = 's32[1]{0}', space=sflag, size = 0x4, scoped, tag = 'scoped memory for tpu_custom_call.1']
    #allocation4 [shape = 's32[1]{0}', space=sflag, size = 0x4, scoped, tag = 'scoped memory for tpu_custom_call.1']
    #allocation5 [shape = 'u8[512]{0}', space=vmem, size = 0x400, scoped, tag = 'output window, operand 0, single buffered']
    %6 = vsyncpa [#allocation3], 0
    %7 = vsyncpa [#allocation4], 0
    // Predicated region
    $region2: #{tpu_custom_call.1} parent=1 // pred_check
      _
    $region3: #{tpu_custom_call.1} parent=1 // pred_check_branch
      %9 = sbr.rel (0) target = $region5
    $region4: #{tpu_custom_call.1} parent=1 // pred_region
      %11 = vsyncadd [#allocation3], 0
      %s13 = sshll.u32 %s0, 4
      %s14 = int_to_ptr.hbm [resolvable:$true] %s13
      %s15 = sshll.u32 [#allocation2], 4
      %s16 = int_to_ptr.vmem [resolvable:$true] %s15
      %18 = dma.hbm_to_vmem [thread:$0]  %s14, 256, %s16, [#allocation3]
    $region5: #{tpu_custom_call.1} parent=1 // pred_fallthru
      _
    // Predicated region
    $region6: #{tpu_custom_call.1} parent=1 // pred_check
      _
    $region7: #{tpu_custom_call.1} parent=1 // pred_check_branch
      %20 = sbr.rel (0) target = $region9
    $region8: #{tpu_custom_call.1} parent=1 // pred_region
      %22 = dma.done [#allocation3], 256
    $region9: #{tpu_custom_call.1} parent=1 // pred_fallthru
      _
    %s23 = smul.u32 0, 2
    %s24 = smul.addr %s23, 8
    %s25 = scalar_lea.vmem [#allocation2], %s24
    %v26 = vld [vmem:[%s25] sm:$0xff]
    %v27 = vld [vmem:[%s25 + $0x8] sm:$0xff]
    %v28 = vmul.f32 %v26, %v26
    %v29 = vmul.f32 %v27, %v27
    %v30 = vadd.f32 %v28, 0.0
    %v31 = vadd.f32 %v29, 0.0
    %v32 = vadd.f32 %v30, %v31
    %33 = vadd.xlane.f32.xlu0 %v32
    %v34 = vpop.xlane.xlu0 %33
    %v35 = vrot.slane %v34, 4
    %v36 = vadd.f32 %v34, %v35
    %v37 = vrot.slane %v36, 2
    %v38 = vadd.f32 %v36, %v37
    %v39 = vrot.slane %v38, 1
    %v40 = vadd.f32 %v38, %v39
    %s41 = vtos %v40
    %v42 = vstv %s41
    %43 = vst [vmem:[#allocation5] sm:$0x1] %v42
    // Predicated region
    $region10: #{tpu_custom_call.1} parent=1 // pred_check
      _
    $region11: #{tpu_custom_call.1} parent=1 // pred_check_branch
      %45 = sbr.rel (0) target = $region13
    $region12: #{tpu_custom_call.1} parent=1 // pred_region
      %47 = vsyncadd [#allocation4], 0
      %s49 = sshll.u32 [#allocation5], 4
      %s50 = int_to_ptr.vmem [resolvable:$true] %s49
      %s51 = sshll.u32 %s1, 4
      %s52 = int_to_ptr.hbm [resolvable:$true] %s51
      %54 = dma.vmem_to_hbm [thread:$0]  %s50, 16, %s52, [#allocation4]
    $region13: #{tpu_custom_call.1} parent=1 // pred_fallthru
      _
    // Predicated region
    $region14: #{tpu_custom_call.1} parent=1 // pred_check
      _
    $region15: #{tpu_custom_call.1} parent=1 // pred_check_branch
      %56 = sbr.rel (0) target = $region17
    $region16: #{tpu_custom_call.1} parent=1 // pred_region
      %58 = dma.done [#allocation4], 16
    $region17: #{tpu_custom_call.1} parent=1 // pred_fallthru
      _
    %59 = vsyncpa [#allocation3], 1
    %60 = vsyncpa [#allocation4], 1

</llo_original>
